<compile_context>
chip_gen: v7x
topology: tpu7x:2x2x1
jax: 0.10.0
libtpu: 0.0.40
codegen_flags: <defaults>
</compile_context>

<pallas_src>
import jax
import jax.numpy as jnp
from jax import lax
from jax.experimental import pallas as pl
from jax.experimental.pallas import tpu as pltpu

_LANE = 128  # TPU lane width; batch tiles are multiples of this

# Contract dim 1 of lhs (weights, (out, in)) with dim 1 of rhs (acts, (tm, in)).
_CONTRACT_FEATURE = (((1,), (1,)), ((), ()))


# --------------------------------------------------------------------------
# Kernels
# --------------------------------------------------------------------------
def _mlp_kernel_obs_act(obs_ref, act_ref, w1o_ref, w1a_ref, b1_ref,
                        w2_ref, b2_ref, w3_ref, b3_ref, o_ref):
    # obs_ref: (tm, Dobs), act_ref: (tm, Dact) -- native batch-major tiles.
    # Fused concat: fc1 split into obs/act partial matmuls, summed here.
    h1 = (lax.dot_general(w1o_ref[...], obs_ref[...], _CONTRACT_FEATURE,
                          preferred_element_type=jnp.float32)
          + lax.dot_general(w1a_ref[...], act_ref[...], _CONTRACT_FEATURE,
                            preferred_element_type=jnp.float32)
          + b1_ref[...])                                     # (H, tm)
    h1 = jnp.maximum(h1, 0.0)
    h2 = jnp.dot(w2_ref[...], h1, preferred_element_type=jnp.float32) + b2_ref[...]
    h2 = jnp.maximum(h2, 0.0)
    # (1, H) @ (H, tm) -> lane-dense (1, tm) result, unmasked stores.
    q = jnp.dot(w3_ref[...], h2, preferred_element_type=jnp.float32) + b3_ref[...]
    o_ref[...] = q.astype(o_ref.dtype)


def _mlp_kernel_obs(obs_ref, w1_ref, b1_ref, w2_ref, b2_ref, w3_ref, b3_ref, o_ref):
    h1 = lax.dot_general(w1_ref[...], obs_ref[...], _CONTRACT_FEATURE,
                         preferred_element_type=jnp.float32) + b1_ref[...]
    h1 = jnp.maximum(h1, 0.0)
    h2 = jnp.dot(w2_ref[...], h1, preferred_element_type=jnp.float32) + b2_ref[...]
    h2 = jnp.maximum(h2, 0.0)
    q = jnp.dot(w3_ref[...], h2, preferred_element_type=jnp.float32) + b3_ref[...]
    o_ref[...] = q.astype(o_ref.dtype)


# --------------------------------------------------------------------------
# Tile-size / VMEM planning
# --------------------------------------------------------------------------
def _vmem_capacity_bytes():
    """Best-effort generation query; conservative (v7x-sized) fallback."""
    try:
        info = pltpu.get_tpu_info()
        cap = getattr(info, "vmem_capacity_bytes", None)
        if cap:
            return int(cap)
    except Exception:
        pass
    return 64 << 20


def _vmem_need_bytes(tm, din, hidden):
    # double-buffered activation input/output tiles
    act_io = 2 * tm * (din + 1)
    # resident weights/biases (default double-buffered by the pipeline)
    weights = 2 * (hidden * din + 3 * hidden + hidden * hidden + 1)
    # f32 intermediates: h1, h2, accumulators, transposed input tile
    inter = 4 * hidden * tm + tm * din
    return 4 * (act_io + weights + inter)


def _pick_tile_and_vmem(batch, din, hidden):
    cap = _vmem_capacity_bytes()
    budget = (3 * cap) // 4
    # Larger batch tiles on 128 MiB VMEM parts (v5e/v6e), smaller on v7x.
    max_tm = 2048 if cap <= (64 << 20) else 4096

    tm = min(max_tm, pl.cdiv(batch, _LANE) * _LANE)
    # Ensure >= 2 grid steps when possible so the "parallel" batch axis can be
    # split across v7x's two TensorCores (negligible cost on 1-TC chips).
    if pl.cdiv(batch, tm) < 2 and batch > _LANE:
        tm = max(_LANE, pl.cdiv(batch, 2 * _LANE) * _LANE)
    # Shrink until the double-buffered tiles + intermediates fit VMEM budget.
    while tm > _LANE and _vmem_need_bytes(tm, din, hidden) > budget:
        tm = max(_LANE, tm // 2)

    need = _vmem_need_bytes(tm, din, hidden)
    vmem_limit = int(min(max(32 << 20, (need * 3) // 2 + (8 << 20)), budget))
    return tm, vmem_limit


# --------------------------------------------------------------------------
# Wrapper
# --------------------------------------------------------------------------
def flatten_mlp_forward(obs, params, action=None):
    """Pallas implementation of flatten_mlp.forward.

    obs:    (B, input_dims) float32
    action: (B, action_dims) float32 or None
    params: w1 (H, Din), b1 (H, 1), w2 (H, H), b2 (H, 1), w3 (1, H), b3 (1, 1)
            -- PyTorch (out, in) weight layout.
    returns: (B, 1) float32
    """
    B, Dobs = obs.shape
    H, Din = params["w1"].shape

    tm, vmem_limit = _pick_tile_and_vmem(B, Din, H)
    grid = (pl.cdiv(B, tm),)

    def resident(shape):
        # Weight/bias blocks: full array, same block every step (VMEM-resident).
        return pl.BlockSpec(shape, lambda i: (0, 0))

    def batched_in(d):
        # Activation tiles in native (B, D) layout: contiguous tm*D DMA per step.
        return pl.BlockSpec((tm, d), lambda i: (i, 0))

    out_spec = pl.BlockSpec((1, tm), lambda i: (0, i))

    w1, b1 = params["w1"], params["b1"]
    w2, b2 = params["w2"], params["b2"]
    w3, b3 = params["w3"], params["b3"]

    # Advisory cost hint so XLA schedules neighbouring ops sensibly.
    flops = 2 * B * (Din * H + H * H + H)
    weight_bytes = 4 * (H * Din + H + H * H + H + H + 1)
    bytes_accessed = 4 * (B * Din + B) + weight_bytes
    cost = pl.CostEstimate(flops=flops, transcendentals=0,
                           bytes_accessed=bytes_accessed)

    cparams = pltpu.CompilerParams(dimension_semantics=("parallel",),
                                   vmem_limit_bytes=vmem_limit)

    if action is not None:
        Dact = action.shape[1]
        # Fused concat: split fc1 weight along its input dim.
        w1_obs = w1[:, :Dobs]
        w1_act = w1[:, Dobs:]
        out = pl.pallas_call(
            _mlp_kernel_obs_act,
            out_shape=jax.ShapeDtypeStruct((1, B), jnp.float32),
            grid=grid,
            in_specs=[
                batched_in(Dobs), batched_in(Dact),
                resident((H, Dobs)), resident((H, Dact)), resident((H, 1)),
                resident((H, H)), resident((H, 1)),
                resident((1, H)), resident((1, 1)),
            ],
            out_specs=out_spec,
            compiler_params=cparams,
            cost_estimate=cost,
        )(obs, action, w1_obs, w1_act, b1, w2, b2, w3, b3)
    else:
        out = pl.pallas_call(
            _mlp_kernel_obs,
            out_shape=jax.ShapeDtypeStruct((1, B), jnp.float32),
            grid=grid,
            in_specs=[
                batched_in(Dobs),
                resident((H, Dobs)), resident((H, 1)),
                resident((H, H)), resident((H, 1)),
                resident((1, H)), resident((1, 1)),
            ],
            out_specs=out_spec,
            compiler_params=cparams,
            cost_estimate=cost,
        )(obs, w1, b1, w2, b2, w3, b3)

    # (1, B) -> (B, 1): trivial reshape-like transpose, no real data movement.
    return jnp.transpose(out)


# --------------------------------------------------------------------------
# Init (matches weights_init_: xavier_uniform(gain=1) weights, zero biases)
# --------------------------------------------------------------------------
def init_params(key, input_dims, hidden_size, action_dims=None):
    din = input_dims + (action_dims if action_dims is not None else 0)

    def xavier(key, fan_out, fan_in):
        bound = jnp.sqrt(6.0 / (fan_in + fan_out))
        return jax.random.uniform(
            key, (fan_out, fan_in), dtype=jnp.float32, minval=-bound, maxval=bound
        )

    k1, k2, k3 = jax.random.split(key, 3)
    return {
        "w1": xavier(k1, hidden_size, din),
        "b1": jnp.zeros((hidden_size, 1), jnp.float32),
        "w2": xavier(k2, hidden_size, hidden_size),
        "b2": jnp.zeros((hidden_size, 1), jnp.float32),
        "w3": xavier(k3, 1, hidden_size),
        "b3": jnp.zeros((1, 1), jnp.float32),
    }


def _reference_forward(obs, params, action=None):
    x = jnp.concatenate([obs, action], axis=1) if action is not None else obs
    x = jax.nn.relu(x @ params["w1"].T + params["b1"].T)
    x = jax.nn.relu(x @ params["w2"].T + params["b2"].T)
    return x @ params["w3"].T + params["b3"].T


if __name__ == "__main__":
    key = jax.random.PRNGKey(0)
    k_obs, k_act, k_par, k_obs2, k_act2 = jax.random.split(key, 5)

    batch = 2
    input_dims = 16
    action_dims = 8
    hidden_size = 32

    obs = jax.random.normal(k_obs, (batch, input_dims), dtype=jnp.float32)
    action = jax.random.normal(k_act, (batch, action_dims), dtype=jnp.float32)
    params = init_params(k_par, input_dims, hidden_size, action_dims)

    q = jax.block_until_ready(flatten_mlp_forward(obs, params, action))
    q_ref = _reference_forward(obs, params, action)
    assert q.shape == (batch, 1)
    assert jnp.allclose(q, q_ref, atol=1e-4, rtol=1e-4), (q, q_ref)

    # action=None path (obs-only Q-network variant).
    params_o = init_params(k_par, input_dims, hidden_size, None)
    q_o = jax.block_until_ready(flatten_mlp_forward(obs, params_o, None))
    q_o_ref = _reference_forward(obs, params_o, None)
    assert q_o.shape == (batch, 1)
    assert jnp.allclose(q_o, q_o_ref, atol=1e-4, rtol=1e-4), (q_o, q_o_ref)

    # Multi-step grid with a ragged batch tail (exercises grid=2 + partial block).
    batch2 = 200
    obs2 = jax.random.normal(k_obs2, (batch2, input_dims), dtype=jnp.float32)
    act2 = jax.random.normal(k_act2, (batch2, action_dims), dtype=jnp.float32)
    q2 = jax.block_until_ready(flatten_mlp_forward(obs2, params, act2))
    q2_ref = _reference_forward(obs2, params, act2)
    assert q2.shape == (batch2, 1)
    assert jnp.allclose(q2, q2_ref, atol=1e-4, rtol=1e-4)

    print("KERNEL_OK")
</pallas_src>

<mosaic_0001>
module attributes {stable_mosaic.version = 11 : i64} {
  func.func @_mlp_kernel_obs_act(%arg0: i32, %arg1: memref<128x16xf32, #tpu.memory_space<vmem>>, %arg2: memref<128x8xf32, #tpu.memory_space<vmem>>, %arg3: memref<32x16xf32, #tpu.memory_space<vmem>>, %arg4: memref<32x8xf32, #tpu.memory_space<vmem>>, %arg5: memref<32x1xf32, #tpu.memory_space<vmem>>, %arg6: memref<32x32xf32, #tpu.memory_space<vmem>>, %arg7: memref<32x1xf32, #tpu.memory_space<vmem>>, %arg8: memref<1x32xf32, #tpu.memory_space<vmem>>, %arg9: memref<1x1xf32, #tpu.memory_space<vmem>>, %arg10: memref<1x128xf32, #tpu.memory_space<vmem>>) attributes {dimension_semantics = [#tpu.dimension_semantics<parallel>], iteration_bounds = array<i64: 1>, scalar_prefetch = 0 : i64, scratch_operands = 0 : i64, tpu.core_type = #tpu.core_type<tc>, window_params = [{transform_indices = @transform_0, window_bounds = array<i64: 128, 16>}, {transform_indices = @transform_1, window_bounds = array<i64: 128, 8>}, {pipeline_mode = #tpu.pipeline_mode<synchronous>, transform_indices = @transform_2, window_bounds = array<i64: 32, 16>}, {pipeline_mode = #tpu.pipeline_mode<synchronous>, transform_indices = @transform_3, window_bounds = array<i64: 32, 8>}, {pipeline_mode = #tpu.pipeline_mode<synchronous>, transform_indices = @transform_4, window_bounds = array<i64: 32, 1>}, {pipeline_mode = #tpu.pipeline_mode<synchronous>, transform_indices = @transform_5, window_bounds = array<i64: 32, 32>}, {pipeline_mode = #tpu.pipeline_mode<synchronous>, transform_indices = @transform_6, window_bounds = array<i64: 32, 1>}, {pipeline_mode = #tpu.pipeline_mode<synchronous>, transform_indices = @transform_7, window_bounds = array<i64: 1, 32>}, {pipeline_mode = #tpu.pipeline_mode<synchronous>, transform_indices = @transform_8, window_bounds = array<i64: 1, 1>}, {transform_indices = @transform_9, window_bounds = array<i64: 1, 128>}]} {
    %c0 = arith.constant 0 : index
    %c0_0 = arith.constant 0 : index
    %0 = vector.load %arg3[%c0, %c0_0] : memref<32x16xf32, #tpu.memory_space<vmem>>, vector<32x16xf32>
    %c0_1 = arith.constant 0 : index
    %c0_2 = arith.constant 0 : index
    %1 = vector.load %arg1[%c0_1, %c0_2] : memref<128x16xf32, #tpu.memory_space<vmem>>, vector<128x16xf32>
    %cst = arith.constant dense<0.000000e+00> : vector<32x128xf32>
    %2 = tpu.matmul %0, %1, %cst {dimension_numbers = #tpu.dot_dimension_numbers<[1], [1], [0], [0], [0, 0, 1, 0], [], []>} : vector<32x16xf32>, vector<128x16xf32>, vector<32x128xf32> -> vector<32x128xf32>
    %c0_3 = arith.constant 0 : index
    %c0_4 = arith.constant 0 : index
    %3 = vector.load %arg4[%c0_3, %c0_4] : memref<32x8xf32, #tpu.memory_space<vmem>>, vector<32x8xf32>
    %c0_5 = arith.constant 0 : index
    %c0_6 = arith.constant 0 : index
    %4 = vector.load %arg2[%c0_5, %c0_6] : memref<128x8xf32, #tpu.memory_space<vmem>>, vector<128x8xf32>
    %cst_7 = arith.constant dense<0.000000e+00> : vector<32x128xf32>
    %5 = tpu.matmul %3, %4, %cst_7 {dimension_numbers = #tpu.dot_dimension_numbers<[1], [1], [0], [0], [0, 0, 1, 0], [], []>} : vector<32x8xf32>, vector<128x8xf32>, vector<32x128xf32> -> vector<32x128xf32>
    %6 = arith.addf %2, %5 : vector<32x128xf32>
    %c0_8 = arith.constant 0 : index
    %c0_9 = arith.constant 0 : index
    %7 = vector.load %arg5[%c0_8, %c0_9] : memref<32x1xf32, #tpu.memory_space<vmem>>, vector<32x1xf32>
    %8 = vector.broadcast %7 : vector<32x1xf32> to vector<32x128xf32>
    %9 = arith.addf %6, %8 : vector<32x128xf32>
    %cst_10 = arith.constant 0.000000e+00 : f32
    %10 = vector.broadcast %cst_10 : f32 to vector<32x128xf32>
    %11 = arith.maximumf %9, %10 : vector<32x128xf32>
    %c0_11 = arith.constant 0 : index
    %c0_12 = arith.constant 0 : index
    %12 = vector.load %arg6[%c0_11, %c0_12] : memref<32x32xf32, #tpu.memory_space<vmem>>, vector<32x32xf32>
    %cst_13 = arith.constant dense<0.000000e+00> : vector<32x128xf32>
    %13 = tpu.matmul %12, %11, %cst_13 {dimension_numbers = #tpu.dot_dimension_numbers<[1], [0], [0], [1], [0, 0, 1, 1], [], []>} : vector<32x32xf32>, vector<32x128xf32>, vector<32x128xf32> -> vector<32x128xf32>
    %c0_14 = arith.constant 0 : index
    %c0_15 = arith.constant 0 : index
    %14 = vector.load %arg7[%c0_14, %c0_15] : memref<32x1xf32, #tpu.memory_space<vmem>>, vector<32x1xf32>
    %15 = vector.broadcast %14 : vector<32x1xf32> to vector<32x128xf32>
    %16 = arith.addf %13, %15 : vector<32x128xf32>
    %cst_16 = arith.constant 0.000000e+00 : f32
    %17 = vector.broadcast %cst_16 : f32 to vector<32x128xf32>
    %18 = arith.maximumf %16, %17 : vector<32x128xf32>
    %c0_17 = arith.constant 0 : index
    %c0_18 = arith.constant 0 : index
    %19 = vector.load %arg8[%c0_17, %c0_18] : memref<1x32xf32, #tpu.memory_space<vmem>>, vector<1x32xf32>
    %cst_19 = arith.constant dense<0.000000e+00> : vector<1x128xf32>
    %20 = tpu.matmul %19, %18, %cst_19 {dimension_numbers = #tpu.dot_dimension_numbers<[1], [0], [0], [1], [0, 0, 1, 1], [], []>} : vector<1x32xf32>, vector<32x128xf32>, vector<1x128xf32> -> vector<1x128xf32>
    %c0_20 = arith.constant 0 : index
    %c0_21 = arith.constant 0 : index
    %21 = vector.load %arg9[%c0_20, %c0_21] : memref<1x1xf32, #tpu.memory_space<vmem>>, vector<1x1xf32>
    %22 = vector.broadcast %21 : vector<1x1xf32> to vector<1x128xf32>
    %23 = arith.addf %20, %22 : vector<1x128xf32>
    %c0_22 = arith.constant 0 : index
    %c0_23 = arith.constant 0 : index
    %24 = vector.load %arg10[%c0_22, %c0_23] : memref<1x128xf32, #tpu.memory_space<vmem>>, vector<1x128xf32>
    tpu.vector_store %arg10[%c0_22, %c0_23], %23 {strides = array<i32>} : memref<1x128xf32, #tpu.memory_space<vmem>>, vector<1x128xf32>,
    return
  }
  func.func @transform_0(%arg0: i32) -> (i32, i32) {
    %c0_i32 = arith.constant 0 : i32
    %c0_i32_0 = arith.constant 0 : i32
    return %arg0, %c0_i32 : i32, i32
  }
  func.func @transform_1(%arg0: i32) -> (i32, i32) {
    %c0_i32 = arith.constant 0 : i32
    %c0_i32_0 = arith.constant 0 : i32
    return %arg0, %c0_i32 : i32, i32
  }
  func.func @transform_2(%arg0: i32) -> (i32, i32) {
    %c0_i32 = arith.constant 0 : i32
    %c0_i32_0 = arith.constant 0 : i32
    %c0_i32_1 = arith.constant 0 : i32
    return %c0_i32, %c0_i32_0 : i32, i32
  }
  func.func @transform_3(%arg0: i32) -> (i32, i32) {
    %c0_i32 = arith.constant 0 : i32
    %c0_i32_0 = arith.constant 0 : i32
    %c0_i32_1 = arith.constant 0 : i32
    return %c0_i32, %c0_i32_0 : i32, i32
  }
  func.func @transform_4(%arg0: i32) -> (i32, i32) {
    %c0_i32 = arith.constant 0 : i32
    %c0_i32_0 = arith.constant 0 : i32
    %c0_i32_1 = arith.constant 0 : i32
    return %c0_i32, %c0_i32_0 : i32, i32
  }
  func.func @transform_5(%arg0: i32) -> (i32, i32) {
    %c0_i32 = arith.constant 0 : i32
    %c0_i32_0 = arith.constant 0 : i32
    %c0_i32_1 = arith.constant 0 : i32
    return %c0_i32, %c0_i32_0 : i32, i32
  }
  func.func @transform_6(%arg0: i32) -> (i32, i32) {
    %c0_i32 = arith.constant 0 : i32
    %c0_i32_0 = arith.constant 0 : i32
    %c0_i32_1 = arith.constant 0 : i32
    return %c0_i32, %c0_i32_0 : i32, i32
  }
  func.func @transform_7(%arg0: i32) -> (i32, i32) {
    %c0_i32 = arith.constant 0 : i32
    %c0_i32_0 = arith.constant 0 : i32
    %c0_i32_1 = arith.constant 0 : i32
    return %c0_i32, %c0_i32_0 : i32, i32
  }
  func.func @transform_8(%arg0: i32) -> (i32, i32) {
    %c0_i32 = arith.constant 0 : i32
    %c0_i32_0 = arith.constant 0 : i32
    %c0_i32_1 = arith.constant 0 : i32
    return %c0_i32, %c0_i32_0 : i32, i32
  }
  func.func @transform_9(%arg0: i32) -> (i32, i32) {
    %c0_i32 = arith.constant 0 : i32
    %c0_i32_0 = arith.constant 0 : i32
    return %c0_i32, %arg0 : i32, i32
  }
}

</mosaic_0001>

<llo_original>
// kernel: tpu_custom_call.1
$region0: #{tpu_custom_call.1}
  #allocation0 [shape = 'u32[]', space=smem, size = 0x4, offset = 0x4, fixed_abs, tag = 'smem constant byte address 0x4 - core index']
  #allocation1 [shape = 'u32[144,128]{1,0:T(1,128)}', space=vmem, size = 0x12000, scoped, tag = 'internal scratch']
  #allocation2 [shape = 'f32[1,1]{1,0:T(1,128)S(1)}', space=vmem, size = 0x200, scoped, tag = 'scoped memory for tpu_custom_call.1']
  %s0 = inlined_call_operand.vmem [shape: f32[2,16], index: 0, kind: input, shape index: {}]
  %s1 = inlined_call_operand.vmem [shape: f32[2,8], index: 1, kind: input, shape index: {}]
  %s2 = inlined_call_operand.vmem [shape: f32[32,16], index: 2, kind: input, shape index: {}]
  %s3 = inlined_call_operand.vmem [shape: f32[32,8], index: 3, kind: input, shape index: {}]
  %s4 = inlined_call_operand.vmem [shape: f32[32,1], index: 4, kind: input, shape index: {}]
  %s5 = inlined_call_operand.vmem [shape: f32[32,32], index: 5, kind: input, shape index: {}]
  %s6 = inlined_call_operand.vmem [shape: f32[32,1], index: 6, kind: input, shape index: {}]
  %s7 = inlined_call_operand.vmem [shape: f32[1,32], index: 7, kind: input, shape index: {}]
  %s8 = inlined_call_operand.<no memory space> [shape: f32[1,1], index: 8, kind: input, shape index: {}]
  %s9 = inlined_call_operand.hbm [shape: f32[1,2], index: 9, kind: output, shape index: {}]
  %s10 = sld [smem:[#allocation0]]
  $region46: #{tpu_custom_call.1} parent=0
    _
  %s12 = ssub.s32 1, %s10
  %s13 = scalar_select 0, %s12, %s10
  %v14 = vstv %s8
  %15 = vst [vmem:[#allocation2] sm:$0x1] %v14
  $region1: #{tpu_custom_call.1} parent=0
    #allocation3 [shape = 'u8[512]{0}', space=vmem, size = 0x400, scoped, tag = 'output window, operand 0, single buffered']
    #allocation4 [shape = 's32[1]{0}', space=sflag, size = 0x4, scoped, tag = 'scoped memory for tpu_custom_call.1']
    %16 = vsyncpa [#allocation4], 0
    // Predicated region
    $region2: #{tpu_custom_call.1} parent=1 // pred_check
      _
    $region3: #{tpu_custom_call.1} parent=1 // pred_check_branch
      %18 = sbr.rel (0) target = $region5
    $region4: #{tpu_custom_call.1} parent=1 // pred_region
      _
    $region5: #{tpu_custom_call.1} parent=1 // pred_fallthru
      _
    // Predicated region
    $region6: #{tpu_custom_call.1} parent=1 // pred_check
      _
    $region7: #{tpu_custom_call.1} parent=1 // pred_check_branch
      %20 = sbr.rel (0) target = $region9
    $region8: #{tpu_custom_call.1} parent=1 // pred_region
      _
    $region9: #{tpu_custom_call.1} parent=1 // pred_fallthru
      _
    // Predicated region
    $region10: #{tpu_custom_call.1} parent=1 // pred_check
      _
    $region11: #{tpu_custom_call.1} parent=1 // pred_check_branch
      %22 = sbr.rel (0) target = $region13
    $region12: #{tpu_custom_call.1} parent=1 // pred_region
      _
    $region13: #{tpu_custom_call.1} parent=1 // pred_fallthru
      _
    // Predicated region
    $region14: #{tpu_custom_call.1} parent=1 // pred_check
      _
    $region15: #{tpu_custom_call.1} parent=1 // pred_check_branch
      %24 = sbr.rel (0) target = $region17
    $region16: #{tpu_custom_call.1} parent=1 // pred_region
      _
    $region17: #{tpu_custom_call.1} parent=1 // pred_fallthru
      _
    // Predicated region
    $region18: #{tpu_custom_call.1} parent=1 // pred_check
      _
    $region19: #{tpu_custom_call.1} parent=1 // pred_check_branch
      %26 = sbr.rel (0) target = $region21
    $region20: #{tpu_custom_call.1} parent=1 // pred_region
      _
    $region21: #{tpu_custom_call.1} parent=1 // pred_fallthru
      _
    // Predicated region
    $region22: #{tpu_custom_call.1} parent=1 // pred_check
      _
    $region23: #{tpu_custom_call.1} parent=1 // pred_check_branch
      %28 = sbr.rel (0) target = $region25
    $region24: #{tpu_custom_call.1} parent=1 // pred_region
      _
    $region25: #{tpu_custom_call.1} parent=1 // pred_fallthru
      _
    // Predicated region
    $region26: #{tpu_custom_call.1} parent=1 // pred_check
      _
    $region27: #{tpu_custom_call.1} parent=1 // pred_check_branch
      %30 = sbr.rel (0) target = $region29
    $region28: #{tpu_custom_call.1} parent=1 // pred_region
      _
    $region29: #{tpu_custom_call.1} parent=1 // pred_fallthru
      _
    // Predicated region
    $region30: #{tpu_custom_call.1} parent=1 // pred_check
      _
    $region31: #{tpu_custom_call.1} parent=1 // pred_check_branch
      %32 = sbr.rel (0) target = $region33
    $region32: #{tpu_custom_call.1} parent=1 // pred_region
      _
    $region33: #{tpu_custom_call.1} parent=1 // pred_fallthru
      _
    // Predicated region
    $region34: #{tpu_custom_call.1} parent=1 // pred_check
      _
    $region35: #{tpu_custom_call.1} parent=1 // pred_check_branch
      %34 = sbr.rel (0) target = $region37
    $region36: #{tpu_custom_call.1} parent=1 // pred_region
      _
    $region37: #{tpu_custom_call.1} parent=1 // pred_fallthru
      _
    %v35 = vld [vmem:[%s2] sm:$0xff]
    %v36 = vld [vmem:[%s2 + $0x8] sm:$0xff]
    %v37 = vld [vmem:[%s2 + $0x10] sm:$0xff]
    %v38 = vld [vmem:[%s2 + $0x18] sm:$0xff]
    %v39 = vld [vmem:[%s0] sm:$0xff]
    %v40 = vld [vmem:[%s0 + $0x8] sm:$0xff]
    %v41 = vld [vmem:[%s0 + $0x10] sm:$0xff]
    %v42 = vld [vmem:[%s0 + $0x18] sm:$0xff]
    %v43 = vld [vmem:[%s0 + $0x20] sm:$0xff]
    %v44 = vld [vmem:[%s0 + $0x28] sm:$0xff]
    %v45 = vld [vmem:[%s0 + $0x30] sm:$0xff]
    %v46 = vld [vmem:[%s0 + $0x38] sm:$0xff]
    %v47 = vld [vmem:[%s0 + $0x40] sm:$0xff]
    %v48 = vld [vmem:[%s0 + $0x48] sm:$0xff]
    %v49 = vld [vmem:[%s0 + $0x50] sm:$0xff]
    %v50 = vld [vmem:[%s0 + $0x58] sm:$0xff]
    %v51 = vld [vmem:[%s0 + $0x60] sm:$0xff]
    %v52 = vld [vmem:[%s0 + $0x68] sm:$0xff]
    %v53 = vld [vmem:[%s0 + $0x70] sm:$0xff]
    %v54 = vld [vmem:[%s0 + $0x78] sm:$0xff]
    %v55 = vld [vmem:[%s3] sm:$0xff]
    %v56 = vld [vmem:[%s3 + $0x8] sm:$0xff]
    %v57 = vld [vmem:[%s3 + $0x10] sm:$0xff]
    %v58 = vld [vmem:[%s3 + $0x18] sm:$0xff]
    %v59 = vld [vmem:[%s1] sm:$0xff]
    %v60 = vld [vmem:[%s1 + $0x8] sm:$0xff]
    %v61 = vld [vmem:[%s1 + $0x10] sm:$0xff]
    %v62 = vld [vmem:[%s1 + $0x18] sm:$0xff]
    %v63 = vld [vmem:[%s1 + $0x20] sm:$0xff]
    %v64 = vld [vmem:[%s1 + $0x28] sm:$0xff]
    %v65 = vld [vmem:[%s1 + $0x30] sm:$0xff]
    %v66 = vld [vmem:[%s1 + $0x38] sm:$0xff]
    %v67 = vld [vmem:[%s1 + $0x40] sm:$0xff]
    %v68 = vld [vmem:[%s1 + $0x48] sm:$0xff]
    %v69 = vld [vmem:[%s1 + $0x50] sm:$0xff]
    %v70 = vld [vmem:[%s1 + $0x58] sm:$0xff]
    %v71 = vld [vmem:[%s1 + $0x60] sm:$0xff]
    %v72 = vld [vmem:[%s1 + $0x68] sm:$0xff]
    %v73 = vld [vmem:[%s1 + $0x70] sm:$0xff]
    %v74 = vld [vmem:[%s1 + $0x78] sm:$0xff]
    %vm75 = vcmask 64512
    %v77 = vsel %vm75, %v55, 0
    %v80 = vsel %vm75, %v56, 0
    %v83 = vsel %vm75, %v57, 0
    %v86 = vsel %vm75, %v58, 0
    %v89 = vsel %vm75, %v59, 0
    %v92 = vsel %vm75, %v60, 0
    %v95 = vsel %vm75, %v61, 0
    %v98 = vsel %vm75, %v62, 0
    %v101 = vsel %vm75, %v63, 0
    %v104 = vsel %vm75, %v64, 0
    %v107 = vsel %vm75, %v65, 0
    %v110 = vsel %vm75, %v66, 0
    %v113 = vsel %vm75, %v67, 0
    %v116 = vsel %vm75, %v68, 0
    %v119 = vsel %vm75, %v69, 0
    %v122 = vsel %vm75, %v70, 0
    %v125 = vsel %vm75, %v71, 0
    %v128 = vsel %vm75, %v72, 0
    %v131 = vsel %vm75, %v73, 0
    %v134 = vsel %vm75, %v74, 0
    %136 = vmatprep.subr.mxu0 0.0
    %137 = vmatpush1.xpose.msra.mxu0 %v89
    %138 = vmatprep.subr.mxu0 0.0
    %139 = vmatpush1.xpose.msra.mxu0 %v92
    %140 = vmatprep.subr.mxu0 0.0
    %141 = vmatpush1.xpose.msra.mxu0 %v95
    %142 = vmatprep.subr.mxu0 0.0
    %143 = vmatpush1.xpose.msra.mxu0 %v98
    %144 = vmatprep.subr.mxu0 0.0
    %145 = vmatpush1.xpose.msra.mxu0 %v101
    %146 = vmatprep.subr.mxu0 0.0
    %147 = vmatpush1.xpose.msra.mxu0 %v104
    %148 = vmatprep.subr.mxu0 0.0
    %149 = vmatpush1.xpose.msra.mxu0 %v107
    %150 = vmatprep.subr.mxu0 0.0
    %151 = vmatpush1.xpose.msra.mxu0 %v110
    %152 = vmatprep.subr.mxu0 0.0
    %153 = vmatpush1.xpose.msra.mxu0 %v113
    %154 = vmatprep.subr.mxu0 0.0
    %155 = vmatpush1.xpose.msra.mxu0 %v116
    %156 = vmatprep.subr.mxu0 0.0
    %157 = vmatpush1.xpose.msra.mxu0 %v119
    %158 = vmatprep.subr.mxu0 0.0
    %159 = vmatpush1.xpose.msra.mxu0 %v122
    %160 = vmatprep.subr.mxu0 0.0
    %161 = vmatpush1.xpose.msra.mxu0 %v125
    %162 = vmatprep.subr.mxu0 0.0
    %163 = vmatpush1.xpose.msra.mxu0 %v128
    %164 = vmatprep.subr.mxu0 0.0
    %165 = vmatpush1.xpose.msra.mxu0 %v131
    %166 = vmatprep.subr.mxu0 0.0
    %167 = vmatpush1.xpose.msra.mxu0 %v134
    %168 = vmatprep.subr.mxu0 0.0
    %169 = vmatpush1.xpose.msra.mxu0 0.0
    %170 = vmatprep.subr.mxu0 0.0
    %171 = vmatpush1.xpose.msra.mxu0 0.0
    %172 = vmatprep.subr.mxu0 0.0
    %173 = vmatpush1.xpose.msra.mxu0 0.0
    %174 = vmatprep.subr.mxu0 0.0
    %175 = vmatpush1.xpose.msra.mxu0 0.0
    %176 = vmatprep.subr.mxu0 0.0
    %177 = vmatpush1.xpose.msra.mxu0 0.0
    %178 = vmatprep.subr.mxu0 0.0
    %179 = vmatpush1.xpose.msra.mxu0 0.0
    %180 = vmatprep.subr.mxu0 0.0
    %181 = vmatpush1.xpose.msra.mxu0 0.0
    %182 = vmatprep.subr.mxu0 0.0
    %183 = vmatpush1.xpose.msra.mxu0 0.0
    %184 = vmatprep.subr.mxu0 0.0
    %185 = vmatpush1.xpose.msra.mxu0 0.0
    %186 = vmatprep.subr.mxu0 0.0
    %187 = vmatpush1.xpose.msra.mxu0 0.0
    %188 = vmatprep.subr.mxu0 0.0
    %189 = vmatpush1.xpose.msra.mxu0 0.0
    %190 = vmatprep.subr.mxu0 0.0
    %191 = vmatpush1.xpose.msra.mxu0 0.0
    %192 = vmatprep.subr.mxu0 0.0
    %193 = vmatpush1.xpose.msra.mxu0 0.0
    %194 = vmatprep.subr.mxu0 0.0
    %195 = vmatpush1.xpose.msra.mxu0 0.0
    %196 = vmatprep.subr.mxu0 0.0
    %197 = vmatpush1.xpose.msra.mxu0 0.0
    %198 = vmatprep.subr.mxu0 0.0
    %199 = vmatpush1.xpose.msra.mxu0 0.0
    %200 = vmatprep.mubr.f32.mxu0 0.0
    %201 = vmatmul.mubr.f32.gmra.mrb[0].mxu0 %v77
    %v202 = vpop.f32.mrb[0].mxu0
    %v203 = vadd.f32 0.0, %v202
    %v204 = vpop.f32.mrb[0].mxu0
    %205 = vmatprep.mubr.f32.mxu0 0.0
    %206 = vmatmul.mubr.f32.gmra.mrb[0].mxu0 %v80
    %v207 = vpop.f32.mrb[0].mxu0
    %v208 = vadd.f32 0.0, %v207
    %v209 = vpop.f32.mrb[0].mxu0
    %210 = vmatprep.mubr.f32.mxu0 0.0
    %211 = vmatmul.mubr.f32.gmra.mrb[0].mxu0 %v83
    %v212 = vpop.f32.mrb[0].mxu0
    %v213 = vadd.f32 0.0, %v212
    %v214 = vpop.f32.mrb[0].mxu0
    %215 = vmatprep.mubr.f32.mxu0 0.0
    %216 = vmatmul.mubr.f32.gmra.mrb[0].mxu0 %v86
    %v217 = vpop.f32.mrb[0].mxu0
    %v218 = vadd.f32 0.0, %v217
    %v219 = vpop.f32.mrb[0].mxu0
    %220 = vdwg.mxu0
    %vm221 = vcmask 130048
    %v223 = vsel %vm221, %v35, 0
    %v226 = vsel %vm221, %v36, 0
    %v229 = vsel %vm221, %v37, 0
    %v232 = vsel %vm221, %v38, 0
    %v235 = vsel %vm221, %v39, 0
    %v238 = vsel %vm221, %v40, 0
    %v241 = vsel %vm221, %v41, 0
    %v244 = vsel %vm221, %v42, 0
    %v247 = vsel %vm221, %v43, 0
    %v250 = vsel %vm221, %v44, 0
    %v253 = vsel %vm221, %v45, 0
    %v256 = vsel %vm221, %v46, 0
    %v259 = vsel %vm221, %v47, 0
    %v262 = vsel %vm221, %v48, 0
    %v265 = vsel %vm221, %v49, 0
    %v268 = vsel %vm221, %v50, 0
    %v271 = vsel %vm221, %v51, 0
    %v274 = vsel %vm221, %v52, 0
    %v277 = vsel %vm221, %v53, 0
    %v280 = vsel %vm221, %v54, 0
    %282 = vmatprep.subr.mxu0 0.0
    %283 = vmatpush1.xpose.msra.mxu0 %v235
    %284 = vmatprep.subr.mxu0 0.0
    %285 = vmatpush1.xpose.msra.mxu0 %v238
    %286 = vmatprep.subr.mxu0 0.0
    %287 = vmatpush1.xpose.msra.mxu0 %v241
    %288 = vmatprep.subr.mxu0 0.0
    %289 = vmatpush1.xpose.msra.mxu0 %v244
    %290 = vmatprep.subr.mxu0 0.0
    %291 = vmatpush1.xpose.msra.mxu0 %v247
    %292 = vmatprep.subr.mxu0 0.0
    %293 = vmatpush1.xpose.msra.mxu0 %v250
    %294 = vmatprep.subr.mxu0 0.0
    %295 = vmatpush1.xpose.msra.mxu0 %v253
    %296 = vmatprep.subr.mxu0 0.0
    %297 = vmatpush1.xpose.msra.mxu0 %v256
    %298 = vmatprep.subr.mxu0 0.0
    %299 = vmatpush1.xpose.msra.mxu0 %v259
    %300 = vmatprep.subr.mxu0 0.0
    %301 = vmatpush1.xpose.msra.mxu0 %v262
    %302 = vmatprep.subr.mxu0 0.0
    %303 = vmatpush1.xpose.msra.mxu0 %v265
    %304 = vmatprep.subr.mxu0 0.0
    %305 = vmatpush1.xpose.msra.mxu0 %v268
    %306 = vmatprep.subr.mxu0 0.0
    %307 = vmatpush1.xpose.msra.mxu0 %v271
    %308 = vmatprep.subr.mxu0 0.0
    %309 = vmatpush1.xpose.msra.mxu0 %v274
    %310 = vmatprep.subr.mxu0 0.0
    %311 = vmatpush1.xpose.msra.mxu0 %v277
    %312 = vmatprep.subr.mxu0 0.0
    %313 = vmatpush1.xpose.msra.mxu0 %v280
    %314 = vmatprep.subr.mxu0 0.0
    %315 = vmatpush1.xpose.msra.mxu0 0.0
    %316 = vmatprep.subr.mxu0 0.0
    %317 = vmatpush1.xpose.msra.mxu0 0.0
    %318 = vmatprep.subr.mxu0 0.0
    %319 = vmatpush1.xpose.msra.mxu0 0.0
    %320 = vmatprep.subr.mxu0 0.0
    %321 = vmatpush1.xpose.msra.mxu0 0.0
    %322 = vmatprep.subr.mxu0 0.0
    %323 = vmatpush1.xpose.msra.mxu0 0.0
    %324 = vmatprep.subr.mxu0 0.0
    %325 = vmatpush1.xpose.msra.mxu0 0.0
    %326 = vmatprep.subr.mxu0 0.0
    %327 = vmatpush1.xpose.msra.mxu0 0.0
    %328 = vmatprep.subr.mxu0 0.0
    %329 = vmatpush1.xpose.msra.mxu0 0.0
    %330 = vmatprep.subr.mxu0 0.0
    %331 = vmatpush1.xpose.msra.mxu0 0.0
    %332 = vmatprep.subr.mxu0 0.0
    %333 = vmatpush1.xpose.msra.mxu0 0.0
    %334 = vmatprep.subr.mxu0 0.0
    %335 = vmatpush1.xpose.msra.mxu0 0.0
    %336 = vmatprep.subr.mxu0 0.0
    %337 = vmatpush1.xpose.msra.mxu0 0.0
    %338 = vmatprep.subr.mxu0 0.0
    %339 = vmatpush1.xpose.msra.mxu0 0.0
    %340 = vmatprep.subr.mxu0 0.0
    %341 = vmatpush1.xpose.msra.mxu0 0.0
    %342 = vmatprep.subr.mxu0 0.0
    %343 = vmatpush1.xpose.msra.mxu0 0.0
    %344 = vmatprep.subr.mxu0 0.0
    %345 = vmatpush1.xpose.msra.mxu0 0.0
    %346 = vmatprep.mubr.f32.mxu0 0.0
    %347 = vmatmul.mubr.f32.gmra.mrb[0].mxu0 %v223
    %v348 = vpop.f32.mrb[0].mxu0
    %v349 = vadd.f32 %v203, %v348
    %v350 = vpop.f32.mrb[0].mxu0
    %351 = vmatprep.mubr.f32.mxu0 0.0
    %352 = vmatmul.mubr.f32.gmra.mrb[0].mxu0 %v226
    %v353 = vpop.f32.mrb[0].mxu0
    %v354 = vadd.f32 %v208, %v353
    %v355 = vpop.f32.mrb[0].mxu0
    %356 = vmatprep.mubr.f32.mxu0 0.0
    %357 = vmatmul.mubr.f32.gmra.mrb[0].mxu0 %v229
    %v358 = vpop.f32.mrb[0].mxu0
    %v359 = vadd.f32 %v213, %v358
    %v360 = vpop.f32.mrb[0].mxu0
    %361 = vmatprep.mubr.f32.mxu0 0.0
    %362 = vmatmul.mubr.f32.gmra.mrb[0].mxu0 %v232
    %v363 = vpop.f32.mrb[0].mxu0
    %v364 = vadd.f32 %v218, %v363
    %v365 = vpop.f32.mrb[0].mxu0
    %366 = vdwg.mxu0
    %v367 = vld [vmem:[%s4] sm:$0xff]
    %v368 = vld [vmem:[%s4 + $0x8] sm:$0xff]
    %v369 = vld [vmem:[%s4 + $0x10] sm:$0xff]
    %v370 = vld [vmem:[%s4 + $0x18] sm:$0xff]
    %372 = vset.pattern.permute.xlu0 0
    %373 = vperm.xlu0 %372, %v367
    %v374 = vpop.permute.xlu0 %373
    %377 = vset.pattern.permute.xlu0 0
    %378 = vperm.xlu0 %377, %v368
    %v379 = vpop.permute.xlu0 %378
    %382 = vset.pattern.permute.xlu0 0
    %383 = vperm.xlu0 %382, %v369
    %v384 = vpop.permute.xlu0 %383
    %387 = vset.pattern.permute.xlu0 0
    %388 = vperm.xlu0 %387, %v370
    %v389 = vpop.permute.xlu0 %388
    %v391 = vadd.f32 %v349, %v374
    %v392 = vadd.f32 %v354, %v379
    %v393 = vadd.f32 %v359, %v384
    %v394 = vadd.f32 %v364, %v389
    %v395 = vmax.f32 %v391, 0.0
    %v396 = vmax.f32 %v392, 0.0
    %v397 = vmax.f32 %v393, 0.0
    %v398 = vmax.f32 %v394, 0.0
    %v399 = vld [vmem:[%s5] sm:$0xff]
    %v400 = vld [vmem:[%s5 + $0x8] sm:$0xff]
    %v401 = vld [vmem:[%s5 + $0x10] sm:$0xff]
    %v402 = vld [vmem:[%s5 + $0x18] sm:$0xff]
    %v403 = vld [vmem:[%s6] sm:$0xff]
    %v404 = vld [vmem:[%s6 + $0x8] sm:$0xff]
    %v405 = vld [vmem:[%s6 + $0x10] sm:$0xff]
    %v406 = vld [vmem:[%s6 + $0x18] sm:$0xff]
    %408 = vset.pattern.permute.xlu0 0
    %409 = vperm.xlu0 %408, %v403
    %v410 = vpop.permute.xlu0 %409
    %413 = vset.pattern.permute.xlu0 0
    %414 = vperm.xlu0 %413, %v404
    %v415 = vpop.permute.xlu0 %414
    %418 = vset.pattern.permute.xlu0 0
    %419 = vperm.xlu0 %418, %v405
    %v420 = vpop.permute.xlu0 %419
    %423 = vset.pattern.permute.xlu0 0
    %424 = vperm.xlu0 %423, %v406
    %v425 = vpop.permute.xlu0 %424
    %vm427 = vcmask 261120
    %v429 = vsel %vm427, %v399, 0
    %v432 = vsel %vm427, %v400, 0
    %v435 = vsel %vm427, %v401, 0
    %v438 = vsel %vm427, %v402, 0
    %440 = vmatprep.subr.mxu0 0.0
    %441 = vmatpush1.msra.mxu0 %v395
    %442 = vmatprep.subr.mxu0 0.0
    %443 = vmatpush1.msra.mxu0 %v396
    %444 = vmatprep.subr.mxu0 0.0
    %445 = vmatpush1.msra.mxu0 %v397
    %446 = vmatprep.subr.mxu0 0.0
    %447 = vmatpush1.msra.mxu0 %v398
    %448 = vmatprep.subr.mxu0 0.0
    %449 = vmatpush1.msra.mxu0 0.0
    %450 = vmatprep.subr.mxu0 0.0
    %451 = vmatpush1.msra.mxu0 0.0
    %452 = vmatprep.subr.mxu0 0.0
    %453 = vmatpush1.msra.mxu0 0.0
    %454 = vmatprep.subr.mxu0 0.0
    %455 = vmatpush1.msra.mxu0 0.0
    %456 = vmatprep.subr.mxu0 0.0
    %457 = vmatpush1.msra.mxu0 0.0
    %458 = vmatprep.subr.mxu0 0.0
    %459 = vmatpush1.msra.mxu0 0.0
    %460 = vmatprep.subr.mxu0 0.0
    %461 = vmatpush1.msra.mxu0 0.0
    %462 = vmatprep.subr.mxu0 0.0
    %463 = vmatpush1.msra.mxu0 0.0
    %464 = vmatprep.subr.mxu0 0.0
    %465 = vmatpush1.msra.mxu0 0.0
    %466 = vmatprep.subr.mxu0 0.0
    %467 = vmatpush1.msra.mxu0 0.0
    %468 = vmatprep.subr.mxu0 0.0
    %469 = vmatpush1.msra.mxu0 0.0
    %470 = vmatprep.subr.mxu0 0.0
    %471 = vmatpush1.msra.mxu0 0.0
    %472 = vmatprep.subr.mxu0 0.0
    %473 = vmatpush1.msra.mxu0 0.0
    %474 = vmatprep.subr.mxu0 0.0
    %475 = vmatpush1.msra.mxu0 0.0
    %476 = vmatprep.subr.mxu0 0.0
    %477 = vmatpush1.msra.mxu0 0.0
    %478 = vmatprep.subr.mxu0 0.0
    %479 = vmatpush1.msra.mxu0 0.0
    %480 = vmatprep.subr.mxu0 0.0
    %481 = vmatpush1.msra.mxu0 0.0
    %482 = vmatprep.subr.mxu0 0.0
    %483 = vmatpush1.msra.mxu0 0.0
    %484 = vmatprep.subr.mxu0 0.0
    %485 = vmatpush1.msra.mxu0 0.0
    %486 = vmatprep.subr.mxu0 0.0
    %487 = vmatpush1.msra.mxu0 0.0
    %488 = vmatprep.subr.mxu0 0.0
    %489 = vmatpush1.msra.mxu0 0.0
    %490 = vmatprep.subr.mxu0 0.0
    %491 = vmatpush1.msra.mxu0 0.0
    %492 = vmatprep.subr.mxu0 0.0
    %493 = vmatpush1.msra.mxu0 0.0
    %494 = vmatprep.subr.mxu0 0.0
    %495 = vmatpush1.msra.mxu0 0.0
    %496 = vmatprep.subr.mxu0 0.0
    %497 = vmatpush1.msra.mxu0 0.0
    %498 = vmatprep.subr.mxu0 0.0
    %499 = vmatpush1.msra.mxu0 0.0
    %500 = vmatprep.subr.mxu0 0.0
    %501 = vmatpush1.msra.mxu0 0.0
    %502 = vmatprep.subr.mxu0 0.0
    %503 = vmatpush1.msra.mxu0 0.0
    %504 = vmatprep.mubr.f32.mxu0 0.0
    %505 = vmatmul.mubr.f32.gmra.mrb[0].mxu0 %v429
    %v506 = vpop.f32.mrb[0].mxu0
    %v507 = vadd.f32 %v410, %v506
    %v508 = vpop.f32.mrb[0].mxu0
    %509 = vmatprep.mubr.f32.mxu0 0.0
    %510 = vmatmul.mubr.f32.gmra.mrb[0].mxu0 %v432
    %v511 = vpop.f32.mrb[0].mxu0
    %v512 = vadd.f32 %v415, %v511
    %v513 = vpop.f32.mrb[0].mxu0
    %514 = vmatprep.mubr.f32.mxu0 0.0
    %515 = vmatmul.mubr.f32.gmra.mrb[0].mxu0 %v435
    %v516 = vpop.f32.mrb[0].mxu0
    %v517 = vadd.f32 %v420, %v516
    %v518 = vpop.f32.mrb[0].mxu0
    %519 = vmatprep.mubr.f32.mxu0 0.0
    %520 = vmatmul.mubr.f32.gmra.mrb[0].mxu0 %v438
    %v521 = vpop.f32.mrb[0].mxu0
    %v522 = vadd.f32 %v425, %v521
    %v523 = vpop.f32.mrb[0].mxu0
    %524 = vdwg.mxu0
    %v525 = vmax.f32 %v507, 0.0
    %v526 = vmax.f32 %v512, 0.0
    %v527 = vmax.f32 %v517, 0.0
    %v528 = vmax.f32 %v522, 0.0
    %v529 = vld [vmem:[%s7] sm:$0x1]
    %v530 = vld [vmem:[#allocation2] sm:$0x1]
    %532 = vset.pattern.permute.xlu0 0
    %533 = vperm.xlu0 %532, %v530
    %v534 = vpop.permute.xlu0 %533
    %v536 = vlaneseq
    %v537 = vshrl.u32 %v536, 7
    %v538 = vsub.s32 0, %v537
    %v539 = vrot.slane %v534, %v538
    %v541 = vsel %vm427, %v529, 0
    %543 = vmatprep.subr.mxu0 0.0
    %544 = vmatpush1.msra.mxu0 %v525
    %545 = vmatprep.subr.mxu0 0.0
    %546 = vmatpush1.msra.mxu0 %v526
    %547 = vmatprep.subr.mxu0 0.0
    %548 = vmatpush1.msra.mxu0 %v527
    %549 = vmatprep.subr.mxu0 0.0
    %550 = vmatpush1.msra.mxu0 %v528
    %551 = vmatprep.subr.mxu0 0.0
    %552 = vmatpush1.msra.mxu0 0.0
    %553 = vmatprep.subr.mxu0 0.0
    %554 = vmatpush1.msra.mxu0 0.0
    %555 = vmatprep.subr.mxu0 0.0
    %556 = vmatpush1.msra.mxu0 0.0
    %557 = vmatprep.subr.mxu0 0.0
    %558 = vmatpush1.msra.mxu0 0.0
    %559 = vmatprep.subr.mxu0 0.0
    %560 = vmatpush1.msra.mxu0 0.0
    %561 = vmatprep.subr.mxu0 0.0
    %562 = vmatpush1.msra.mxu0 0.0
    %563 = vmatprep.subr.mxu0 0.0
    %564 = vmatpush1.msra.mxu0 0.0
    %565 = vmatprep.subr.mxu0 0.0
    %566 = vmatpush1.msra.mxu0 0.0
    %567 = vmatprep.subr.mxu0 0.0
    %568 = vmatpush1.msra.mxu0 0.0
    %569 = vmatprep.subr.mxu0 0.0
    %570 = vmatpush1.msra.mxu0 0.0
    %571 = vmatprep.subr.mxu0 0.0
    %572 = vmatpush1.msra.mxu0 0.0
    %573 = vmatprep.subr.mxu0 0.0
    %574 = vmatpush1.msra.mxu0 0.0
    %575 = vmatprep.subr.mxu0 0.0
    %576 = vmatpush1.msra.mxu0 0.0
    %577 = vmatprep.subr.mxu0 0.0
    %578 = vmatpush1.msra.mxu0 0.0
    %579 = vmatprep.subr.mxu0 0.0
    %580 = vmatpush1.msra.mxu0 0.0
    %581 = vmatprep.subr.mxu0 0.0
    %582 = vmatpush1.msra.mxu0 0.0
    %583 = vmatprep.subr.mxu0 0.0
    %584 = vmatpush1.msra.mxu0 0.0
    %585 = vmatprep.subr.mxu0 0.0
    %586 = vmatpush1.msra.mxu0 0.0
    %587 = vmatprep.subr.mxu0 0.0
    %588 = vmatpush1.msra.mxu0 0.0
    %589 = vmatprep.subr.mxu0 0.0
    %590 = vmatpush1.msra.mxu0 0.0
    %591 = vmatprep.subr.mxu0 0.0
    %592 = vmatpush1.msra.mxu0 0.0
    %593 = vmatprep.subr.mxu0 0.0
    %594 = vmatpush1.msra.mxu0 0.0
    %595 = vmatprep.subr.mxu0 0.0
    %596 = vmatpush1.msra.mxu0 0.0
    %597 = vmatprep.subr.mxu0 0.0
    %598 = vmatpush1.msra.mxu0 0.0
    %599 = vmatprep.subr.mxu0 0.0
    %600 = vmatpush1.msra.mxu0 0.0
    %601 = vmatprep.subr.mxu0 0.0
    %602 = vmatpush1.msra.mxu0 0.0
    %603 = vmatprep.subr.mxu0 0.0
    %604 = vmatpush1.msra.mxu0 0.0
    %605 = vmatprep.subr.mxu0 0.0
    %606 = vmatpush1.msra.mxu0 0.0
    %607 = vmatprep.mubr.f32.mxu0 0.0
    %608 = vmatmul.mubr.f32.gmra.mrb[0].mxu0 %v541
    %v609 = vpop.f32.mrb[0].mxu0
    %v610 = vadd.f32 %v539, %v609
    %v611 = vpop.f32.mrb[0].mxu0
    %612 = vdwg.mxu0
    %613 = vst [vmem:[#allocation3] sm:$0x1] %v610
    // Predicated region
    $region38: #{tpu_custom_call.1} parent=1 // pred_check
      _
    $region39: #{tpu_custom_call.1} parent=1 // pred_check_branch
      %615 = sbr.rel (0) target = $region41
    $region40: #{tpu_custom_call.1} parent=1 // pred_region
      %s617 = ssub.s32 16, 16
      %618 = vsyncadd [#allocation4], %s617
      %s620 = sshll.u32 [#allocation3], 4
      %s621 = int_to_ptr.vmem [resolvable:$true] %s620
      %623 = dma.vmem_to_hbm [thread:$0]  %s621, 16, %s9, [#allocation4]
    $region41: #{tpu_custom_call.1} parent=1 // pred_fallthru
      _
    // Predicated region
    $region42: #{tpu_custom_call.1} parent=1 // pred_check
      _
    $region43: #{tpu_custom_call.1} parent=1 // pred_check_branch
      %625 = sbr.rel (0) target = $region45
    $region44: #{tpu_custom_call.1} parent=1 // pred_region
      %626 = dma.done [#allocation4], 16
    $region45: #{tpu_custom_call.1} parent=1 // pred_fallthru
      _
    %627 = vsyncpa [#allocation4], 1

</llo_original>
